<compile_context>
chip_gen: v7x
topology: tpu7x:2x2x1
jax: 0.10.0
libtpu: 0.0.40
codegen_flags: <defaults>
</compile_context>

<pallas_src>
import functools

import jax
import jax.numpy as jnp
from jax import lax
from jax.experimental import pallas as pl
from jax.experimental.pallas import tpu as pltpu


# ---------------------------------------------------------------------------
# Pallas kernel: layernorm over the last axis of a (TM, D) row tile.
# ---------------------------------------------------------------------------
def _layernorm_kernel(x_ref, gb_ref, o_ref, *, eps, inv_d):
    # x tile in native dtype; accumulate in f32 for numerics.
    x = x_ref[...].astype(jnp.float32)                      # (TM, D)
    mean = jnp.sum(x, axis=-1, keepdims=True) * inv_d        # XLU reduce + mul
    xc = x - mean
    var = jnp.sum(xc * xc, axis=-1, keepdims=True) * inv_d
    inv_std = lax.rsqrt(var + eps)                           # EUP rsqrt
    # gb_ref is (2, D) packed [gamma; beta] in f32; broadcast along sublanes.
    y = xc * inv_std * gb_ref[0:1, :] + gb_ref[1:2, :]
    o_ref[...] = y.astype(o_ref.dtype)


# ---------------------------------------------------------------------------
# Wrapper: flatten leading dims, pick TM from a VMEM budget, call, reshape.
# ---------------------------------------------------------------------------
def _sublane_multiple(dtype):
    itemsize = jnp.dtype(dtype).itemsize
    if itemsize >= 4:
        return 8
    if itemsize == 2:
        return 16
    return 32


def layer_norm(x, gamma=None, beta=None, *, epsilon=1e-10):
    orig_shape = x.shape
    d = orig_shape[-1]
    out_dtype = x.dtype
    # NOTE: D should be a multiple of 128 for lane-dense (unmasked) stores;
    # odd hidden sizes still work but fall back to masked vst.msk stores.

    rows = 1
    for s in orig_shape[:-1]:
        rows *= s
    x2 = x.reshape(rows, d)

    if gamma is None:                       # module default: gamma filled with 1
        gamma = jnp.ones((d,), jnp.float32)
    if beta is None:                        # module default: beta filled with 0
        beta = jnp.zeros((d,), jnp.float32)
    gb = jnp.stack([gamma.astype(jnp.float32).reshape(d),
                    beta.astype(jnp.float32).reshape(d)], axis=0)   # (2, D)

    # ---- Row-tile (TM) selection -------------------------------------------
    sublane = _sublane_multiple(out_dtype)
    bytes_per = jnp.dtype(out_dtype).itemsize

    # VMEM budget for the streamed tiles: 2 input + 2 output double buffers.
    try:
        vmem_cap = int(getattr(pltpu.get_tpu_info(), "vmem_capacity_bytes",
                               64 * 1024 * 1024))
    except Exception:
        vmem_cap = 64 * 1024 * 1024          # v7x per-TC physical (smallest gen)
    budget = min(32 * 1024 * 1024, vmem_cap // 2)
    tm_vmem = max(sublane, budget // (4 * d * bytes_per))

    # Megacore / pipelining: aim for >= 2 grid steps per TensorCore so both
    # cores get work and DMA/compute overlap exists even for small batches.
    num_cores = int(getattr(jax.devices()[0], "num_cores", 2) or 2)
    target_steps = max(2, 2 * num_cores)
    tm_parallel = max(1, -(-rows // target_steps))           # ceil(rows/steps)

    tm = min(tm_vmem, 1024, tm_parallel, max(rows, 1))
    tm = max(sublane, (int(tm) // sublane) * sublane)

    grid = (pl.cdiv(rows, tm),)
    footprint = 4 * tm * d * bytes_per + 4 * 2 * d * 4       # tiles + gb bufs
    vmem_limit = int(min(vmem_cap * 3 // 4,
                         max(32 * 1024 * 1024, footprint + (4 << 20))))

    out = pl.pallas_call(
        functools.partial(_layernorm_kernel, eps=float(epsilon),
                          inv_d=float(1.0 / d)),
        out_shape=jax.ShapeDtypeStruct((rows, d), out_dtype),
        grid=grid,
        in_specs=[
            pl.BlockSpec((tm, d), lambda i: (i, 0)),          # x row tile
            pl.BlockSpec((2, d), lambda i: (0, 0)),           # gamma/beta slab
        ],
        out_specs=pl.BlockSpec((tm, d), lambda i: (i, 0)),
        compiler_params=pltpu.CompilerParams(
            dimension_semantics=("parallel",),
            vmem_limit_bytes=vmem_limit),
    )(x2, gb)

    return out.reshape(orig_shape)


if __name__ == "__main__":
    key = jax.random.PRNGKey(0)
    kx, kg, kb = jax.random.split(key, 3)

    # rows = 2*7 = 14: not a multiple of the row tile, exercising the masked
    # boundary block; hidden = 128 keeps stores lane-dense.
    batch, seq, hidden = 2, 7, 128
    gamma = 1.0 + 0.1 * jax.random.normal(kg, (hidden,), jnp.float32)
    beta = 0.1 * jax.random.normal(kb, (hidden,), jnp.float32)

    def ref_ln(x, g, b, eps=1e-10):
        xf = x.astype(jnp.float32)
        mean = jnp.mean(xf, axis=-1, keepdims=True)
        var = jnp.mean((xf - mean) ** 2, axis=-1, keepdims=True)
        return (xf - mean) / jnp.sqrt(var + eps) * g + b

    fwd = jax.jit(lambda a, g, b: layer_norm(a, g, b, epsilon=1e-10))

    # float32 path
    x32 = jax.random.normal(kx, (batch, seq, hidden), jnp.float32)
    y32 = fwd(x32, gamma, beta)
    jax.block_until_ready(y32)
    assert y32.shape == x32.shape and y32.dtype == x32.dtype
    err32 = float(jnp.max(jnp.abs(y32 - ref_ln(x32, gamma, beta))))
    assert jnp.allclose(y32, ref_ln(x32, gamma, beta), atol=1e-4, rtol=1e-4), err32

    # bfloat16 path: input dtype preserved, math still done in f32 in-kernel.
    xbf = x32.astype(jnp.bfloat16)
    ybf = fwd(xbf, gamma, beta)
    jax.block_until_ready(ybf)
    assert ybf.shape == xbf.shape and ybf.dtype == jnp.bfloat16
    errbf = float(jnp.max(jnp.abs(ybf.astype(jnp.float32) - ref_ln(xbf, gamma, beta))))
    assert jnp.allclose(ybf.astype(jnp.float32), ref_ln(xbf, gamma, beta),
                        atol=5e-2, rtol=5e-2), errbf

    print("KERNEL_OK")
</pallas_src>

<mosaic_0001>
module attributes {stable_mosaic.version = 11 : i64} {
  func.func @_layernorm_kernel(%arg0: i32, %arg1: memref<8x128xf32, #tpu.memory_space<vmem>>, %arg2: memref<2x128xf32, #tpu.memory_space<vmem>>, %arg3: memref<8x128xf32, #tpu.memory_space<vmem>>) attributes {dimension_semantics = [#tpu.dimension_semantics<parallel>], iteration_bounds = array<i64: 2>, scalar_prefetch = 0 : i64, scratch_operands = 0 : i64, tpu.core_type = #tpu.core_type<tc>, window_params = [{transform_indices = @transform_0, window_bounds = array<i64: 8, 128>}, {pipeline_mode = #tpu.pipeline_mode<synchronous>, transform_indices = @transform_1, window_bounds = array<i64: 2, 128>}, {transform_indices = @transform_2, window_bounds = array<i64: 8, 128>}]} {
    %c0 = arith.constant 0 : index
    %c0_0 = arith.constant 0 : index
    %0 = vector.load %arg1[%c0, %c0_0] : memref<8x128xf32, #tpu.memory_space<vmem>>, vector<8x128xf32>
    %cst = arith.constant dense<0.000000e+00> : vector<8xf32>
    %1 = vector.multi_reduction <add>, %0, %cst [1] : vector<8x128xf32> to vector<8xf32>
    %2 = vector.shape_cast %1 : vector<8xf32> to vector<8x1xf32>
    %cst_1 = arith.constant 7.812500e-03 : f32
    %3 = vector.broadcast %cst_1 : f32 to vector<8x1xf32>
    %4 = arith.mulf %2, %3 : vector<8x1xf32>
    %5 = vector.broadcast %4 : vector<8x1xf32> to vector<8x128xf32>
    %6 = arith.subf %0, %5 : vector<8x128xf32>
    %7 = arith.mulf %6, %6 : vector<8x128xf32>
    %cst_2 = arith.constant dense<0.000000e+00> : vector<8xf32>
    %8 = vector.multi_reduction <add>, %7, %cst_2 [1] : vector<8x128xf32> to vector<8xf32>
    %9 = vector.shape_cast %8 : vector<8xf32> to vector<8x1xf32>
    %cst_3 = arith.constant 7.812500e-03 : f32
    %10 = vector.broadcast %cst_3 : f32 to vector<8x1xf32>
    %11 = arith.mulf %9, %10 : vector<8x1xf32>
    %cst_4 = arith.constant 1.000000e-10 : f32
    %12 = vector.broadcast %cst_4 : f32 to vector<8x1xf32>
    %13 = arith.addf %11, %12 : vector<8x1xf32>
    %14 = math.rsqrt %13 : vector<8x1xf32>
    %15 = vector.broadcast %14 : vector<8x1xf32> to vector<8x128xf32>
    %16 = arith.mulf %6, %15 : vector<8x128xf32>
    %c0_5 = arith.constant 0 : index
    %c0_6 = arith.constant 0 : index
    %17 = vector.load %arg2[%c0_5, %c0_6] : memref<2x128xf32, #tpu.memory_space<vmem>>, vector<1x128xf32>
    %18 = vector.broadcast %17 : vector<1x128xf32> to vector<8x128xf32>
    %19 = arith.mulf %16, %18 : vector<8x128xf32>
    %c1 = arith.constant 1 : index
    %c0_7 = arith.constant 0 : index
    %20 = vector.load %arg2[%c1, %c0_7] : memref<2x128xf32, #tpu.memory_space<vmem>>, vector<1x128xf32>
    %21 = vector.broadcast %20 : vector<1x128xf32> to vector<8x128xf32>
    %22 = arith.addf %19, %21 : vector<8x128xf32>
    %c0_8 = arith.constant 0 : index
    %c0_9 = arith.constant 0 : index
    %23 = vector.load %arg3[%c0_8, %c0_9] : memref<8x128xf32, #tpu.memory_space<vmem>>, vector<8x128xf32>
    tpu.vector_store %arg3[%c0_8, %c0_9], %22 {strides = array<i32>} : memref<8x128xf32, #tpu.memory_space<vmem>>, vector<8x128xf32>,
    return
  }
  func.func @transform_0(%arg0: i32) -> (i32, i32) {
    %c0_i32 = arith.constant 0 : i32
    %c0_i32_0 = arith.constant 0 : i32
    return %arg0, %c0_i32 : i32, i32
  }
  func.func @transform_1(%arg0: i32) -> (i32, i32) {
    %c0_i32 = arith.constant 0 : i32
    %c0_i32_0 = arith.constant 0 : i32
    %c0_i32_1 = arith.constant 0 : i32
    return %c0_i32, %c0_i32_0 : i32, i32
  }
  func.func @transform_2(%arg0: i32) -> (i32, i32) {
    %c0_i32 = arith.constant 0 : i32
    %c0_i32_0 = arith.constant 0 : i32
    return %arg0, %c0_i32 : i32, i32
  }
}

</mosaic_0001>

<llo_original>
// kernel: _lambda_.1
$region0: #{_lambda_.1}
  #allocation0 [shape = 'u32[]', space=smem, size = 0x4, offset = 0x4, fixed_abs, tag = 'smem constant byte address 0x4 - core index']
  #allocation1 [shape = 'u32[144,128]{1,0:T(1,128)}', space=vmem, size = 0x12000, scoped, tag = 'internal scratch']
  %s0 = inlined_call_operand.vmem [shape: f32[14,128], index: 0, kind: input, shape index: {}]
  %s1 = inlined_call_operand.vmem [shape: f32[2,128], index: 1, kind: input, shape index: {}]
  %s2 = inlined_call_operand.vmem [shape: f32[14,128], index: 2, kind: output, shape index: {}]
  %s3 = sld [smem:[#allocation0]]
  $region41: #{_lambda_.1} parent=0
    _
  %s5 = ssub.s32 1, %s3
  %s6 = scalar_select 0, %s5, %s3
  loop: start=0, step=1, limit=4
  $region2: #{_lambda_.1} parent=0 // loop_pre_header
    _
  $region3: #{_lambda_.1} parent=0 // loop_header
    %s8 = sphi 0, %s12
    %p9 = scmp.ge.s32.totalorder %s8, 4
    %s18 = sphi 0, %s20
    %s21 = sphi 0, %s18
    %s22 = sphi 0, %s21
    %s38 = sphi 0, %s22
    %s42 = sphi 0, %s42
    %s44 = sphi 0, %s42
    %s45 = sphi 0, %s44
    %s59 = sphi 0, %s45
    %s65 = sphi 0, %s67
    %s68 = sphi 0, %s65
    %s69 = sphi 0, %s68
    %s85 = sphi 0, %s69
  $region4: #{_lambda_.1} parent=0 // loop_header_branch
    %11 = sbr.rel (%p9) target = $region8
  $region5: #{_lambda_.1} parent=0 // loop_body
    %s13 = ssub.s32 %s8, 1
    %s14 = ssub.s32 %s8, 2
    %s15 = sadd.s32 %s8, 1
    %s16 = ssub.s32 %s8, %s15
    %p17 = scmp.eq.s32.totalorder %s16, 0
    %s19 = sadd.s32 %s18, 1
    %s20 = scalar_select %p17, %s18, %s19
    %p23 = pneg %p17
    %p24 = scmp.eq.s32.totalorder %s8, 1
    %p25 = por %p23, %p24
    %p26 = scmp.ne.s32.totalorder %s18, %s21
    %p27 = scmp.eq.s32.totalorder %s8, 0
    %p28 = por %p26, %p27
    %p29 = scmp.ne.s32.totalorder %s18, %s21
    %p30 = scmp.eq.s32.totalorder %s13, 1
    %p31 = por %p29, %p30
    %p32 = scmp.ne.s32.totalorder %s21, %s22
    %p33 = scmp.eq.s32.totalorder %s13, 0
    %p34 = por %p32, %p33
    %p35 = scmp.ne.s32.totalorder %s21, %s22
    %p36 = scmp.eq.s32.totalorder %s14, 1
    %p37 = por %p35, %p36
    %p39 = scmp.ne.s32.totalorder %s22, %s38
    %p40 = scmp.eq.s32.totalorder %s14, 0
    %p41 = por %p39, %p40
    %s43 = sadd.s32 %s42, 1
    %p46 = scmp.eq.s32.totalorder %s8, 1
    %p47 = scmp.ne.s32.totalorder %s42, %s44
    %p48 = scmp.eq.s32.totalorder %s8, 0
    %p49 = por %p47, %p48
    %p50 = scmp.ne.s32.totalorder %s42, %s44
    %p51 = scmp.eq.s32.totalorder %s13, 1
    %p52 = por %p50, %p51
    %p53 = scmp.ne.s32.totalorder %s44, %s45
    %p54 = scmp.eq.s32.totalorder %s13, 0
    %p55 = por %p53, %p54
    %p56 = scmp.ne.s32.totalorder %s44, %s45
    %p57 = scmp.eq.s32.totalorder %s14, 1
    %p58 = por %p56, %p57
    %p60 = scmp.ne.s32.totalorder %s45, %s59
    %p61 = scmp.eq.s32.totalorder %s14, 0
    %p62 = por %p60, %p61
    %s63 = ssub.s32 %s8, %s15
    %p64 = scmp.eq.s32.totalorder %s63, 0
    %s66 = sadd.s32 %s65, 1
    %s67 = scalar_select %p64, %s65, %s66
    %p70 = pneg %p64
    %p71 = scmp.eq.s32.totalorder %s8, 1
    %p72 = por %p70, %p71
    %p73 = scmp.ne.s32.totalorder %s65, %s68
    %p74 = scmp.eq.s32.totalorder %s8, 0
    %p75 = por %p73, %p74
    %p76 = scmp.ne.s32.totalorder %s65, %s68
    %p77 = scmp.eq.s32.totalorder %s13, 1
    %p78 = por %p76, %p77
    %p79 = scmp.ne.s32.totalorder %s68, %s69
    %p80 = scmp.eq.s32.totalorder %s13, 0
    %p81 = por %p79, %p80
    %p82 = scmp.ne.s32.totalorder %s68, %s69
    %p83 = scmp.eq.s32.totalorder %s14, 1
    %p84 = por %p82, %p83
    %p86 = scmp.ne.s32.totalorder %s69, %s85
    %p87 = scmp.eq.s32.totalorder %s14, 0
    %p88 = por %p86, %p87
    %p89 = scmp.le.s32.totalorder 1, %s8
    %p90 = scmp.lt.s32.totalorder %s8, 3
    %p91 = pnand %p89, %p90
    %p92 = pneg %p91
    // Predicated region
    $region9: #{_lambda_.1} parent=5 // pred_check
      _
    $region10: #{_lambda_.1} parent=5 // pred_check_branch
      %94 = sbr.rel (%p91) target = $region12
    $region11: #{_lambda_.1} parent=5 // pred_region
      %s95 = ssub.s32 %s8, 1
      // Predicated region
      $region13: #{_lambda_.1} parent=11 // pred_check
        %p96 = pneg %p55
      $region14: #{_lambda_.1} parent=11 // pred_check_branch
        %98 = sbr.rel (%p96) target = $region16
      $region15: #{_lambda_.1} parent=11 // pred_region
        _
      $region16: #{_lambda_.1} parent=11 // pred_fallthru
        _
    $region12: #{_lambda_.1} parent=5 // pred_fallthru
      _
    %p99 = scmp.lt.s32.totalorder %s8, 2
    // Predicated region
    $region17: #{_lambda_.1} parent=5 // pred_check
      %p100 = pneg %p99
    $region18: #{_lambda_.1} parent=5 // pred_check_branch
      %102 = sbr.rel (%p100) target = $region20
    $region19: #{_lambda_.1} parent=5 // pred_region
      // Predicated region
      $region21: #{_lambda_.1} parent=19 // pred_check
        %p103 = pneg %p28
      $region22: #{_lambda_.1} parent=19 // pred_check_branch
        %105 = sbr.rel (%p103) target = $region24
      $region23: #{_lambda_.1} parent=19 // pred_region
        %p106 = scmp.lt.s32.totalorder %s8, 1
        %s107 = scalar_select %p106, %s8, 1
        %s108 = smul.addr %s107, 8
        %s109 = scalar_lea.vmem %s0, %s108
      $region24: #{_lambda_.1} parent=19 // pred_fallthru
        _
    $region20: #{_lambda_.1} parent=5 // pred_fallthru
      _
    %p110 = scmp.le.s32.totalorder 1, %s8
    %p111 = scmp.lt.s32.totalorder %s8, 3
    %p112 = pnand %p110, %p111
    %p113 = pneg %p112
    // Predicated region
    $region25: #{_lambda_.1} parent=5 // pred_check
      _
    $region26: #{_lambda_.1} parent=5 // pred_check_branch
      %115 = sbr.rel (%p112) target = $region28
    $region27: #{_lambda_.1} parent=5 // pred_region
      %s116 = ssub.s32 %s8, 1
      %p117 = scmp.lt.s32.totalorder %s13, 1
      %s118 = scalar_select %p117, %s13, 1
      %s119 = smul.addr %s118, 8
      %s120 = scalar_lea.vmem %s0, %s119
      %p121 = pneg %p34
      %p122 = pneg %p31
      %p123 = pneg %p55
      %p124 = pneg %p52
      %p125 = pneg %p81
      %p126 = pneg %p78
      %p127 = scmp.lt.s32.totalorder %s13, 1
      %s128 = scalar_select %p127, %s13, 1
      %s129 = smul.addr %s128, 8
      %s130 = scalar_lea.vmem %s2, %s129
      %p131 = scmp.lt.s32.totalorder %s13, 1
      %s132 = scalar_select %p131, %s13, 1
      %s133 = smul.addr %s132, 8
      %s134 = scalar_lea.vmem %s0, %s133
      %p135 = scmp.lt.s32.totalorder %s13, 1
      %s136 = scalar_select %p135, %s13, 1
      %s137 = smul.addr %s136, 8
      %s138 = scalar_lea.vmem %s2, %s137
      %v139 = vld [vmem:[%s134] sm:$0xff]
      %140 = vadd.xlane.f32.xlu0 %v139
      %v141 = vpop.xlane.xlu0 %140
      %v142 = vmul.f32 %v141, 0.0078125
      %v143 = vsub.f32 %v139, %v142
      %v144 = vmul.f32 %v143, %v143
      %145 = vadd.xlane.f32.xlu0 %v144
      %v146 = vpop.xlane.xlu0 %145
      %v147 = vmul.f32 %v146, 0.0078125
      %v148 = vadd.f32 %v147, 1e-10
      %v149 = vrsqrt.pop %v148
      %v150 = vmul.f32 %v143, %v149
      %v151 = vld [vmem:[%s1] sm:$0x1]
      %v152 = vlaneseq
      %v153 = vshrl.u32 %v152, 7
      %v154 = vsub.s32 0, %v153
      %v155 = vrot.slane %v151, %v154
      %v156 = vmul.f32 %v150, %v155
      %v157 = vld [vmem:[%s1 + $0x1] sm:$0x1]
      %v158 = vlaneseq
      %v159 = vshrl.u32 %v158, 7
      %v160 = vsub.s32 0, %v159
      %v161 = vrot.slane %v157, %v160
      %v162 = vadd.f32 %v156, %v161
      %163 = vst [vmem:[%s138] sm:$0xff] %v162
      %p164 = scmp.lt.s32.totalorder %s13, 1
      %s165 = scalar_select %p164, %s13, 1
      %s166 = smul.addr %s165, 8
      %s167 = scalar_lea.vmem %s2, %s166
      // Predicated region
      $region29: #{_lambda_.1} parent=27 // pred_check
        %p168 = pneg %p78
      $region30: #{_lambda_.1} parent=27 // pred_check_branch
        %170 = sbr.rel (%p168) target = $region32
      $region31: #{_lambda_.1} parent=27 // pred_region
        _
      $region32: #{_lambda_.1} parent=27 // pred_fallthru
        _
    $region28: #{_lambda_.1} parent=5 // pred_fallthru
      _
    %p171 = scmp.le.s32.totalorder 2, %s8
    // Predicated region
    $region33: #{_lambda_.1} parent=5 // pred_check
      %p172 = pneg %p171
    $region34: #{_lambda_.1} parent=5 // pred_check_branch
      %174 = sbr.rel (%p172) target = $region36
    $region35: #{_lambda_.1} parent=5 // pred_region
      %s175 = ssub.s32 %s8, 2
      // Predicated region
      $region37: #{_lambda_.1} parent=35 // pred_check
        %p176 = pneg %p84
      $region38: #{_lambda_.1} parent=35 // pred_check_branch
        %178 = sbr.rel (%p176) target = $region40
      $region39: #{_lambda_.1} parent=35 // pred_region
        %p179 = scmp.lt.s32.totalorder %s14, 1
        %s180 = scalar_select %p179, %s14, 1
        %s181 = smul.addr %s180, 8
        %s182 = scalar_lea.vmem %s2, %s181
      $region40: #{_lambda_.1} parent=35 // pred_fallthru
        _
    $region36: #{_lambda_.1} parent=5 // pred_fallthru
      _
  $region6: #{_lambda_.1} parent=0 // loop_footer
    %s12 = sadd.s32 1, %s8
  $region7: #{_lambda_.1} parent=0 // loop_footer_branch
    %7 = sbr.rel target = $region3
  $region8: #{_lambda_.1} parent=0 // loop_exit
    _

</llo_original>
